<compile_context>
chip_gen: v7x
topology: tpu7x:2x2x1
jax: 0.10.0
libtpu: 0.0.40
codegen_flags: <defaults>
</compile_context>

<pallas_src>
import functools

import jax
import jax.numpy as jnp
from jax import lax
from jax.experimental import pallas as pl
from jax.experimental.pallas import tpu as pltpu


# ------------------------- synthetic q_net geometry --------------------------
IN_C = 4                            # stacked frames
IMG = 16                            # 16x16 observations
C1, C2, FC = 8, 16, 32              # conv1 / conv2 / fc1 widths
NUM_ACTIONS = 6
K1, S1 = 4, 2                       # conv1: 4x4, stride 2
K2 = 3                              # conv2: 3x3, stride 1
OH1 = (IMG - K1) // S1 + 1          # 7
OW1 = OH1
OH2 = OH1 - K2 + 1                  # 5
OW2 = OH2
SPAN = (OH2 - 1) * OW1 + OW2        # 33: conv1-grid rows covered by one conv2 tap slice
LANES = 128
FLATK = OH2 * LANES                 # 640: dense-packed fc1 input width


def _rnd8(n):
    return ((n + 7) // 8) * 8


# ----------------------------- fused Pallas kernel ---------------------------

def _fused_qnet_kernel(cols1_ref, w1_ref, b1_ref, w2_ref, b2_ref,
                       w3_ref, b3_ref, w4_ref, b4_ref,
                       act_ref, h1_ref, h2_ref, rp_ref, flat_ref, *, tb):
    m1 = tb * OH1 * OW1                 # conv1 rows in this batch tile
    m2 = (tb - 1) * OH1 * OW1 + SPAN    # rows of the single batched conv2 GEMM
    mrp = m2 - (OW2 - 1)                # rows of the x-packed slab

    # ---- conv1: one GEMM over every patch row of the tile; bf16 VMEM scratch ----
    h1 = jnp.dot(cols1_ref[0], w1_ref[...], preferred_element_type=jnp.float32)
    h1_ref[0:m1, :] = jnp.maximum(h1 + b1_ref[...], 0.0).astype(jnp.bfloat16)

    # ---- conv2: channel-pack the 9 taps (8 ch each -> 8-lane group per tap) with
    #      whole-slab lane rolls, then ONE K=128 GEMM for the whole tile.  Lanes >= 8
    #      of h1 are exactly zero, so rolled copies never collide; "wrap" rows between
    #      samples are computed but never selected by the flatten below. ----
    cols2 = h1_ref[0:m2, :].astype(jnp.float32)
    for t in range(1, K2 * K2):
        i, j = divmod(t, K2)
        tap = h1_ref[i * OW1 + j: i * OW1 + j + m2, :].astype(jnp.float32)
        cols2 = cols2 + pltpu.roll(tap, C1 * t, axis=1)
    h2 = jnp.dot(cols2.astype(jnp.bfloat16), w2_ref[...],
                 preferred_element_type=jnp.float32)
    h2_ref[0:m2, :] = jnp.maximum(h2 + b2_ref[...], 0.0).astype(jnp.bfloat16)

    # ---- fc1 input packing: per conv2 output row, pack its 5 x-positions
    #      (16 ch each -> 16-lane group) with lane rolls, batched over the slab ----
    rp = h2_ref[0:mrp, :].astype(jnp.float32)
    for x in range(1, OW2):
        rp = rp + pltpu.roll(h2_ref[x:x + mrp, :].astype(jnp.float32), C2 * x, axis=1)
    rp_ref[0:mrp, :] = rp.astype(jnp.bfloat16)

    # ---- gather the 5 valid packed rows per sample into the dense [tb, 640] LHS ----
    for b in range(tb):
        for y in range(OH2):
            r = b * OH1 * OW1 + y * OW1
            flat_ref[b:b + 1, LANES * y:LANES * (y + 1)] = rp_ref[r:r + 1, :]

    # ---- fc1 + ReLU (f32 epilogue) ----
    h3 = jnp.dot(flat_ref[...], w3_ref[...], preferred_element_type=jnp.float32)
    h3 = jnp.maximum(h3 + b3_ref[...], 0.0)

    # ---- q head + greedy argmax (first maximal index, like torch.argmax) ----
    q = jnp.dot(h3.astype(jnp.bfloat16), w4_ref[...],
                preferred_element_type=jnp.float32) + b4_ref[...]
    col = lax.broadcasted_iota(jnp.int32, q.shape, 1)
    q = jnp.where(col < NUM_ACTIONS, q, -jnp.inf)     # mask lane padding (f32 compare)
    mx = jnp.max(q, axis=-1, keepdims=True)
    cand = jnp.where(q == mx, col, q.shape[-1])
    act_ref[0] = jnp.min(cand, axis=-1, keepdims=True).astype(jnp.int32)


def fused_qnet_greedy_actions(cols1, pp, *, batch, batch_tile):
    """Fused conv1+conv2+fc1+q-head+argmax over a 'parallel' batch-tile grid."""
    assert batch % batch_tile == 0
    nt = batch // batch_tile
    tb = batch_tile
    m1 = tb * OH1 * OW1
    m2 = (tb - 1) * OH1 * OW1 + SPAN
    mrp = m2 - (OW2 - 1)
    cols1 = cols1.reshape(nt, m1, K1 * K1 * IN_C)

    def const_spec(shape):
        return pl.BlockSpec(shape, lambda t, _n=len(shape): (0,) * _n)

    kernel = functools.partial(_fused_qnet_kernel, tb=tb)
    out = pl.pallas_call(
        kernel,
        out_shape=jax.ShapeDtypeStruct((nt, tb, 1), jnp.int32),
        grid=(nt,),
        in_specs=[
            pl.BlockSpec((1, m1, K1 * K1 * IN_C), lambda t: (t, 0, 0)),
            const_spec(pp["w1"].shape), const_spec(pp["b1"].shape),
            const_spec(pp["w2"].shape), const_spec(pp["b2"].shape),
            const_spec(pp["w3"].shape), const_spec(pp["b3"].shape),
            const_spec(pp["w4"].shape), const_spec(pp["b4"].shape),
        ],
        out_specs=pl.BlockSpec((1, tb, 1), lambda t: (t, 0, 0)),
        scratch_shapes=[
            pltpu.VMEM((_rnd8(m1), LANES), jnp.bfloat16),    # conv1 output (bf16)
            pltpu.VMEM((_rnd8(m2), LANES), jnp.bfloat16),    # conv2 output (bf16)
            pltpu.VMEM((_rnd8(mrp), LANES), jnp.bfloat16),   # x-packed conv2 rows
            pltpu.VMEM((tb, FLATK), jnp.bfloat16),           # dense fc1 LHS
        ],
        compiler_params=pltpu.CompilerParams(
            dimension_semantics=("parallel",),
            vmem_limit_bytes=32 * 1024 * 1024),
    )(cols1, pp["w1"], pp["b1"], pp["w2"], pp["b2"],
      pp["w3"], pp["b3"], pp["w4"], pp["b4"])
    return out.reshape(batch, 1)


# ------------------------------ JAX glue --------------------------------------

def _im2col_conv1(x_nhwc):
    """4x4 / stride-2 patch extraction for conv1 -> [B*7*7, 64] (batch-major rows)."""
    B = x_nhwc.shape[0]
    patches = [x_nhwc[:, i:i + S1 * OH1:S1, j:j + S1 * OW1:S1, :]
               for i in range(K1) for j in range(K1)]
    cols = jnp.concatenate(patches, axis=-1)                  # [B, 7, 7, 64]
    return cols.reshape(B * OH1 * OW1, K1 * K1 * IN_C)


@functools.partial(jax.jit, static_argnames=("batch_tile",))
def multinet_q_policy_forward(obs_nchw, prepared_params, *, batch_tile=1):
    """MultiNetQPolicyWrapper.forward: greedy actions [B, 1] (int32 on TPU)."""
    B, C, H, W = obs_nchw.shape
    assert (C, H, W) == (IN_C, IMG, IMG)
    x = jnp.transpose(obs_nchw, (0, 2, 3, 1)).astype(jnp.float32)   # NCHW -> NHWC
    # TODO(synk): conv1's stride-2 im2col stays a plain-JAX strided gather fused under
    # this jit; everything downstream runs inside the single fused Pallas kernel.
    cols1 = _im2col_conv1(x).astype(jnp.bfloat16)
    return fused_qnet_greedy_actions(cols1, prepared_params,
                                     batch=B, batch_tile=batch_tile)


def _detect_roll_sign():
    """One-time probe: +1 if pltpu.roll matches jnp.roll's direction, else -1."""
    def kernel(x_ref, o_ref):
        o_ref[...] = pltpu.roll(x_ref[...], 8, axis=1)
    x = jnp.zeros((8, LANES), jnp.float32).at[:, 0].set(1.0)
    y = pl.pallas_call(kernel,
                       out_shape=jax.ShapeDtypeStruct((8, LANES), jnp.float32))(x)
    return 1 if float(y[0, 8]) > 0.5 else -1


def init_params(key):
    """Deterministic synthetic q_net parameters (small DQN-like CNN + MLP), f32."""
    ks = jax.random.split(key, 8)
    s = 0.05
    w1 = (jax.random.normal(ks[0], (K1 * K1 * IN_C, C1)) * s).astype(jnp.float32)
    b1 = (jax.random.normal(ks[1], (C1,)) * s).astype(jnp.float32)
    w2 = (jax.random.normal(ks[2], (K2 * K2 * C1, C2)) * s).astype(jnp.float32)
    b2 = (jax.random.normal(ks[3], (C2,)) * s).astype(jnp.float32)
    w3 = (jax.random.normal(ks[4], (C2 * OH2 * OW2, FC)) * s).astype(jnp.float32)
    b3 = (jax.random.normal(ks[5], (FC,)) * s).astype(jnp.float32)
    w4 = (jax.random.normal(ks[6], (FC, NUM_ACTIONS)) * s).astype(jnp.float32)
    b4 = (jax.random.normal(ks[7], (NUM_ACTIONS,)) * s).astype(jnp.float32)
    return dict(w1=w1, b1=b1, w2=w2, b2=b2, w3=w3, b3=b3, w4=w4, b4=b4)


def prepare_params(params, roll_sign=1):
    """One-time weight prep: lane-dense packed layouts matching the in-kernel rolls.
    w2p: [128,128] (9 taps x 8 ch packed in K);  w3p: [640,128] (5 groups of x/ch)."""
    f32, bf16 = jnp.float32, jnp.bfloat16

    w1p = jnp.zeros((K1 * K1 * IN_C, LANES), f32).at[:, :C1].set(params["w1"]).astype(bf16)
    b1p = jnp.zeros((1, LANES), f32).at[0, :C1].set(params["b1"])

    w2blk = params["w2"].reshape(K2 * K2, C1, C2)
    w2p = jnp.zeros((LANES, LANES), f32)
    for t in range(K2 * K2):
        blk = jnp.zeros((LANES, LANES), f32).at[:C1, :C2].set(w2blk[t])
        w2p = w2p + jnp.roll(blk, roll_sign * C1 * t, axis=0)
    w2p = w2p.astype(bf16)
    b2p = jnp.zeros((1, LANES), f32).at[0, :C2].set(params["b2"])

    w3blk = params["w3"].reshape(OH2, OW2, C2, FC)       # NHWC-flatten feature order
    groups = []
    for y in range(OH2):
        g = jnp.zeros((LANES, LANES), f32)
        for x in range(OW2):
            blk = jnp.zeros((LANES, LANES), f32).at[:C2, :FC].set(w3blk[y, x])
            g = g + jnp.roll(blk, roll_sign * C2 * x, axis=0)
        groups.append(g)
    w3p = jnp.concatenate(groups, axis=0).astype(bf16)   # [640, 128]
    b3p = jnp.zeros((1, LANES), f32).at[0, :FC].set(params["b3"])

    w4p = jnp.zeros((LANES, LANES), f32).at[:FC, :NUM_ACTIONS].set(params["w4"]).astype(bf16)
    b4p = jnp.zeros((1, LANES), f32).at[0, :NUM_ACTIONS].set(params["b4"])
    return dict(w1=w1p, b1=b1p, w2=w2p, b2=b2p, w3=w3p, b3=b3p, w4=w4p, b4=b4p)


def reference_forward(obs_nchw, pp, roll_sign=1):
    """Pure-JAX (XLA) reference mirroring the packed layouts / bf16 casts exactly."""
    x = jnp.transpose(obs_nchw, (0, 2, 3, 1)).astype(jnp.float32)
    B = x.shape[0]
    cols1 = _im2col_conv1(x).astype(jnp.bfloat16)
    h1 = jnp.maximum(jnp.dot(cols1, pp["w1"], preferred_element_type=jnp.float32)
                     + pp["b1"], 0.0).astype(jnp.bfloat16)
    h1 = h1.reshape(B, OH1, OW1, LANES)

    cols2 = jnp.zeros((B, OH2, OW2, LANES), jnp.float32)
    for t in range(K2 * K2):
        i, j = divmod(t, K2)
        tap = h1[:, i:i + OH2, j:j + OW2, :].astype(jnp.float32)
        cols2 = cols2 + jnp.roll(tap, roll_sign * C1 * t, axis=-1)
    h2 = jnp.maximum(
        jnp.dot(cols2.reshape(B * OH2 * OW2, LANES).astype(jnp.bfloat16), pp["w2"],
                preferred_element_type=jnp.float32) + pp["b2"], 0.0).astype(jnp.bfloat16)
    h2 = h2.reshape(B, OH2, OW2, LANES)

    grp = jnp.zeros((B, OH2, LANES), jnp.float32)
    for xx in range(OW2):
        grp = grp + jnp.roll(h2[:, :, xx, :].astype(jnp.float32),
                             roll_sign * C2 * xx, axis=-1)
    flat = grp.reshape(B, FLATK).astype(jnp.bfloat16)

    h3 = jnp.maximum(jnp.dot(flat, pp["w3"], preferred_element_type=jnp.float32)
                     + pp["b3"], 0.0)
    q = jnp.dot(h3.astype(jnp.bfloat16), pp["w4"],
                preferred_element_type=jnp.float32) + pp["b4"]
    return jnp.argmax(q[:, :NUM_ACTIONS], axis=-1, keepdims=True).astype(jnp.int32)


if __name__ == "__main__":
    key = jax.random.PRNGKey(0)
    k_obs, k_par = jax.random.split(key)

    # Small Atari-like observation: batch=2, 4 stacked frames, 16x16 spatial, NCHW.
    obs = jax.random.normal(k_obs, (2, IN_C, IMG, IMG), dtype=jnp.float32)
    params = init_params(k_par)

    roll_sign = _detect_roll_sign()            # one-time pltpu.roll direction probe
    prepared = prepare_params(params, roll_sign)

    # batch_tile=1 -> grid=(2,) marked "parallel": one sample per grid step (lands on
    # v7x's 2 TensorCores); use a larger tile (e.g. 8-64) for real batch sizes.
    actions = multinet_q_policy_forward(obs, prepared, batch_tile=1)
    actions = jax.block_until_ready(actions)
    assert actions.shape == (2, 1) and actions.dtype == jnp.int32

    # torch.argmax returns int64; we emit int32 on TPU (intentional).
    ref_actions = reference_forward(obs, prepared, roll_sign)
    assert bool(jnp.all(actions == ref_actions))
    print("KERNEL_OK")
</pallas_src>

<mosaic_0001>
module attributes {stable_mosaic.version = 11 : i64} {
  func.func @kernel(%arg0: memref<8x128xf32, #tpu.memory_space<vmem>>, %arg1: memref<8x128xf32, #tpu.memory_space<vmem>>) attributes {dimension_semantics = [], scalar_prefetch = 0 : i64, scratch_operands = 0 : i64, tpu.core_type = #tpu.core_type<tc>} {
    %c0 = arith.constant 0 : index
    %c0_0 = arith.constant 0 : index
    %0 = vector.load %arg0[%c0, %c0_0] : memref<8x128xf32, #tpu.memory_space<vmem>>, vector<8x128xf32>
    %c8_i32 = arith.constant 8 : i32
    %1 = tpu.dynamic_rotate %0 by %c8_i32 dim 1 : vector<8x128xf32>, i32 -> vector<8x128xf32>
    %c0_1 = arith.constant 0 : index
    %c0_2 = arith.constant 0 : index
    %2 = vector.load %arg1[%c0_1, %c0_2] : memref<8x128xf32, #tpu.memory_space<vmem>>, vector<8x128xf32>
    tpu.vector_store %arg1[%c0_1, %c0_2], %1 {strides = array<i32>} : memref<8x128xf32, #tpu.memory_space<vmem>>, vector<8x128xf32>,
    return
  }
}

</mosaic_0001>

<llo_original>
// kernel: tpu_custom_call.1
$region0: #{tpu_custom_call.1}
  #allocation0 [shape = 'u32[]', space=smem, size = 0x4, offset = 0x4, fixed_abs, tag = 'smem constant byte address 0x4 - core index']
  #allocation1 [shape = 'u32[144,128]{1,0:T(1,128)}', space=vmem, size = 0x12000, scoped, tag = 'internal scratch']
  %s0 = inlined_call_operand.hbm [shape: f32[8,128], index: 0, kind: input, shape index: {}]
  %s1 = inlined_call_operand.hbm [shape: f32[8,128], index: 1, kind: output, shape index: {}]
  %s2 = sld [smem:[#allocation0]]
  $region18: #{tpu_custom_call.1} parent=0
    _
  %s4 = ssub.s32 1, %s2
  %s5 = scalar_select 0, %s4, %s2
  $region1: #{tpu_custom_call.1} parent=0
    #allocation2 [shape = 'u8[4096]{0}', space=vmem, size = 0x1000, scoped, tag = 'input window, operand 0, single buffered']
    #allocation3 [shape = 's32[1]{0}', space=sflag, size = 0x4, scoped, tag = 'scoped memory for tpu_custom_call.1']
    #allocation4 [shape = 's32[1]{0}', space=sflag, size = 0x4, scoped, tag = 'scoped memory for tpu_custom_call.1']
    #allocation5 [shape = 'u8[4096]{0}', space=vmem, size = 0x1000, scoped, tag = 'output window, operand 0, single buffered']
    %6 = vsyncpa [#allocation3], 0
    %7 = vsyncpa [#allocation4], 0
    // Predicated region
    $region2: #{tpu_custom_call.1} parent=1 // pred_check
      _
    $region3: #{tpu_custom_call.1} parent=1 // pred_check_branch
      %9 = sbr.rel (0) target = $region5
    $region4: #{tpu_custom_call.1} parent=1 // pred_region
      %s11 = ssub.s32 128, 128
      %12 = vsyncadd [#allocation3], %s11
      %s14 = sshll.u32 [#allocation2], 4
      %s15 = int_to_ptr.vmem [resolvable:$true] %s14
      %17 = dma.hbm_to_vmem [thread:$0]  %s0, 128, %s15, [#allocation3]
    $region5: #{tpu_custom_call.1} parent=1 // pred_fallthru
      _
    // Predicated region
    $region6: #{tpu_custom_call.1} parent=1 // pred_check
      _
    $region7: #{tpu_custom_call.1} parent=1 // pred_check_branch
      %19 = sbr.rel (0) target = $region9
    $region8: #{tpu_custom_call.1} parent=1 // pred_region
      %20 = dma.done [#allocation3], 128
    $region9: #{tpu_custom_call.1} parent=1 // pred_fallthru
      _
    %v21 = vld [vmem:[#allocation2] sm:$0xff]
    %22 = vrot.lane.b32.xlu0 %v21, 8
    %v23 = vpop.permute.xlu0 %22
    %24 = vst [vmem:[#allocation5] sm:$0xff] %v23
    // Predicated region
    $region10: #{tpu_custom_call.1} parent=1 // pred_check
      _
    $region11: #{tpu_custom_call.1} parent=1 // pred_check_branch
      %26 = sbr.rel (0) target = $region13
    $region12: #{tpu_custom_call.1} parent=1 // pred_region
      %s28 = ssub.s32 128, 128
      %29 = vsyncadd [#allocation4], %s28
      %s31 = sshll.u32 [#allocation5], 4
      %s32 = int_to_ptr.vmem [resolvable:$true] %s31
      %34 = dma.vmem_to_hbm [thread:$0]  %s32, 128, %s1, [#allocation4]
    $region13: #{tpu_custom_call.1} parent=1 // pred_fallthru
      _
    // Predicated region
    $region14: #{tpu_custom_call.1} parent=1 // pred_check
      _
    $region15: #{tpu_custom_call.1} parent=1 // pred_check_branch
      %36 = sbr.rel (0) target = $region17
    $region16: #{tpu_custom_call.1} parent=1 // pred_region
      %37 = dma.done [#allocation4], 128
    $region17: #{tpu_custom_call.1} parent=1 // pred_fallthru
      _
    %38 = vsyncpa [#allocation3], 1
    %39 = vsyncpa [#allocation4], 1

</llo_original>
